<compile_context>
chip_gen: v6e
topology: v6e:2x2x1
jax: 0.10.0
libtpu: 0.0.40
codegen_flags: <defaults>
</compile_context>

<pallas_src>
import functools

import jax
import jax.numpy as jnp
from jax import lax
from jax.experimental import pallas as pl
from jax.experimental.pallas import tpu as pltpu


def _cdiv(a, b):
    return -(-a // b)


def _round_up(n, m):
    return ((n + m - 1) // m) * m


# Contract the *last* dim of both operands:  A (m,k) . B (n,k) -> (m,n).
_DN_T = (((1,), (1,)), ((), ()))


def _matmul_t(a, b):
    return lax.dot_general(a, b, _DN_T, preferred_element_type=jnp.float32)


def _lane_moments(h, ones_row):
    """sum / sum-of-squares over the lane (batch) axis via the idle MXU."""
    s = _matmul_t(h, ones_row)          # (F, 1)
    q = _matmul_t(h * h, ones_row)      # (F, 1)
    return s, q


# --------------------------------------------------------------------------
# Path 1: whole batch resident in VMEM -> one fused kernel, BN in-kernel.
# --------------------------------------------------------------------------
def _fused_kernel(x_ref, w1_ref, v1_ref, w2_ref, v2_ref, w3_ref, b3_ref,
                  o_ref, *, eps):
    nb = x_ref.shape[0]
    inv_n = jnp.float32(1.0 / nb)
    ones = jnp.ones((1, nb), jnp.float32)

    # Layer 1: h1 = relu(W1 @ x^T + b1)  -> (20, B), batch on lanes.
    v1 = v1_ref[...]                                   # (20, 3) = [b, gamma, beta]
    h1 = _matmul_t(w1_ref[...], x_ref[...]) + v1[:, 0:1]
    h1 = jnp.maximum(h1, 0.0)

    # BatchNorm1d(20), full-batch biased variance (training mode).
    s1, q1 = _lane_moments(h1, ones)
    mean1 = s1 * inv_n
    var1 = jnp.maximum(q1 * inv_n - mean1 * mean1, 0.0)
    h1n = (h1 - mean1) * lax.rsqrt(var1 + eps) * v1[:, 1:2] + v1[:, 2:3]

    # Layer 2 + BatchNorm1d(40).
    v2 = v2_ref[...]
    h2 = jnp.dot(w2_ref[...], h1n, preferred_element_type=jnp.float32) + v2[:, 0:1]
    h2 = jnp.maximum(h2, 0.0)
    s2, q2 = _lane_moments(h2, ones)
    mean2 = s2 * inv_n
    var2 = jnp.maximum(q2 * inv_n - mean2 * mean2, 0.0)
    h2n = (h2 - mean2) * lax.rsqrt(var2 + eps) * v2[:, 1:2] + v2[:, 2:3]

    # Layer 3 + ReLU; lane-dense (1, B) store.
    h3 = jnp.dot(w3_ref[...], h2n, preferred_element_type=jnp.float32) + b3_ref[...]
    o_ref[...] = jnp.maximum(h3, 0.0)


def _fused_forward(x, params, *, eps, stream_dtype):
    (w1, b1, g1, be1, w2, b2, g2, be2, w3, b3) = params
    B, _ = x.shape

    xs = x.astype(stream_dtype)
    w1s = w1.astype(stream_dtype)
    vec1 = jnp.stack([b1, g1, be1], axis=1)            # (20, 3)
    vec2 = jnp.stack([b2, g2, be2], axis=1)            # (40, 3)
    b3c = b3[:, None]                                  # (1, 1)

    outT = pl.pallas_call(
        functools.partial(_fused_kernel, eps=eps),
        out_shape=jax.ShapeDtypeStruct((1, B), jnp.float32),
        compiler_params=pltpu.CompilerParams(vmem_limit_bytes=32 * 1024 * 1024),
    )(xs, w1s, vec1, w2, vec2, w3, b3c)
    return outT[0][:, None]                            # (B, 1)


# --------------------------------------------------------------------------
# Path 2: large batch -> three batch-parallel tiled calls, BN folded into the
# next layer's weights between calls.
# --------------------------------------------------------------------------
def _moments1_kernel(x_ref, w1_ref, b1_ref, s_ref, q_ref):
    h1 = jnp.maximum(_matmul_t(w1_ref[...], x_ref[...]) + b1_ref[...], 0.0)
    ones = jnp.ones((1, x_ref.shape[0]), jnp.float32)
    s, q = _lane_moments(h1, ones)
    s_ref[...] = jnp.broadcast_to(s, s_ref.shape)
    q_ref[...] = jnp.broadcast_to(q, q_ref.shape)


def _moments2_kernel(x_ref, w1_ref, b1_ref, w2_ref, b2_ref, s_ref, q_ref):
    h1 = jnp.maximum(_matmul_t(w1_ref[...], x_ref[...]) + b1_ref[...], 0.0)
    h2 = jnp.maximum(
        jnp.dot(w2_ref[...], h1, preferred_element_type=jnp.float32) + b2_ref[...],
        0.0)
    ones = jnp.ones((1, x_ref.shape[0]), jnp.float32)
    s, q = _lane_moments(h2, ones)
    s_ref[...] = jnp.broadcast_to(s, s_ref.shape)
    q_ref[...] = jnp.broadcast_to(q, q_ref.shape)


def _output_kernel(x_ref, w1_ref, b1_ref, w2_ref, b2_ref, w3_ref, b3_ref, o_ref):
    h1 = jnp.maximum(_matmul_t(w1_ref[...], x_ref[...]) + b1_ref[...], 0.0)
    h2 = jnp.maximum(
        jnp.dot(w2_ref[...], h1, preferred_element_type=jnp.float32) + b2_ref[...],
        0.0)
    h3 = jnp.dot(w3_ref[...], h2, preferred_element_type=jnp.float32) + b3_ref[...]
    o_ref[...] = jnp.maximum(h3, 0.0)                  # lane-dense (1, tb) store


def _tiled_forward(x, params, *, tile_b, eps, stream_dtype):
    (w1, b1, g1, be1, w2, b2, g2, be2, w3, b3) = params
    B, f_in = x.shape
    F1, F2 = w1.shape[0], w2.shape[0]

    T = _cdiv(B, tile_b)
    tb = _round_up(_cdiv(B, T), 128)
    b_pad = T * tb
    n_pad = b_pad - B

    xs = x.astype(stream_dtype)
    if n_pad:
        xs = jnp.pad(xs, ((0, n_pad), (0, 0)))         # zero rows; corrected below
    w1s = w1.astype(stream_dtype)
    b1c = b1[:, None]                                  # (20, 1) f32

    cparams = pltpu.CompilerParams(
        dimension_semantics=("parallel",),             # megacore on v7x
        vmem_limit_bytes=32 * 1024 * 1024)

    x_spec = pl.BlockSpec((tb, f_in), lambda t: (t, 0))

    def w_spec(a):                                     # resident small operands
        return pl.BlockSpec(a.shape, lambda t: (0, 0))

    def mom_spec(F):                                   # per-tile partial moments
        return pl.BlockSpec((F, 128), lambda t: (0, t))

    def reduce_partials(p, F):
        # every lane of a tile's block holds the same value -> take lane 0.
        return p.reshape(F, T, 128)[:, :, 0].sum(axis=1)

    # ---- call A: first-layer partial moments --------------------------------
    s1p, q1p = pl.pallas_call(
        _moments1_kernel,
        grid=(T,),
        in_specs=[x_spec, w_spec(w1s), w_spec(b1c)],
        out_specs=(mom_spec(F1), mom_spec(F1)),
        out_shape=(jax.ShapeDtypeStruct((F1, 128 * T), jnp.float32),) * 2,
        compiler_params=cparams,
    )(xs, w1s, b1c)

    # Analytic removal of the zero-padded rows (h1_pad == relu(b1)).
    h1p = jnp.maximum(b1, 0.0)
    s1 = reduce_partials(s1p, F1) - n_pad * h1p
    q1 = reduce_partials(q1p, F1) - n_pad * h1p * h1p
    mean1 = s1 / B
    var1 = jnp.maximum(q1 / B - mean1 * mean1, 0.0)
    scale1 = g1 * lax.rsqrt(var1 + eps)
    shift1 = be1 - mean1 * scale1
    # Fold BN1 into layer 2.
    w2f = w2 * scale1[None, :]
    b2f = w2 @ shift1 + b2
    b2c = b2f[:, None]                                 # (40, 1)

    # ---- call B: second-layer partial moments -------------------------------
    s2p, q2p = pl.pallas_call(
        _moments2_kernel,
        grid=(T,),
        in_specs=[x_spec, w_spec(w1s), w_spec(b1c), w_spec(w2f), w_spec(b2c)],
        out_specs=(mom_spec(F2), mom_spec(F2)),
        out_shape=(jax.ShapeDtypeStruct((F2, 128 * T), jnp.float32),) * 2,
        compiler_params=cparams,
    )(xs, w1s, b1c, w2f, b2c)

    h2p = jnp.maximum(w2f @ h1p + b2f, 0.0)            # padded column of h2
    s2 = reduce_partials(s2p, F2) - n_pad * h2p
    q2 = reduce_partials(q2p, F2) - n_pad * h2p * h2p
    mean2 = s2 / B
    var2 = jnp.maximum(q2 / B - mean2 * mean2, 0.0)
    scale2 = g2 * lax.rsqrt(var2 + eps)
    shift2 = be2 - mean2 * scale2
    # Fold BN2 into layer 3.
    w3f = w3 * scale2[None, :]
    b3c = (w3 @ shift2 + b3)[:, None]                  # (1, 1)

    # ---- call C: final output ------------------------------------------------
    outT = pl.pallas_call(
        _output_kernel,
        grid=(T,),
        in_specs=[x_spec, w_spec(w1s), w_spec(b1c), w_spec(w2f), w_spec(b2c),
                  w_spec(w3f), w_spec(b3c)],
        out_specs=pl.BlockSpec((1, tb), lambda t: (0, t)),
        out_shape=jax.ShapeDtypeStruct((1, b_pad), jnp.float32),
        compiler_params=cparams,
    )(xs, w1s, b1c, w2f, b2c, w3f, b3c)

    return outT[0, :B][:, None]                        # (B, 1)


@functools.partial(jax.jit, static_argnames=("tile_b", "eps", "stream_dtype"))
def binary_classifier(x, params, *, tile_b=16384, eps=1e-5,
                      stream_dtype=jnp.bfloat16):
    """Forward pass of BinaryClassifier (training-mode BatchNorm statistics).

    x: (B, 14).  Returns (B, 1) float32.
    """
    B, _ = x.shape
    if B <= tile_b:
        return _fused_forward(x, params, eps=eps, stream_dtype=stream_dtype)
    return _tiled_forward(x, params, tile_b=tile_b, eps=eps,
                          stream_dtype=stream_dtype)


# --------------------------------------------------------------------------
# Parameters / reference
# --------------------------------------------------------------------------
def init_params(key):
    """Parameters in PyTorch-native layouts (nn.Linear weight = (out, in))."""
    ks = jax.random.split(key, 6)
    w1 = jax.random.normal(ks[0], (20, 14), jnp.float32) * 0.1
    b1 = jax.random.normal(ks[1], (20,), jnp.float32) * 0.1
    w2 = jax.random.normal(ks[2], (40, 20), jnp.float32) * 0.1
    b2 = jax.random.normal(ks[3], (40,), jnp.float32) * 0.1
    w3 = jax.random.normal(ks[4], (1, 40), jnp.float32) * 0.1
    b3 = jax.random.normal(ks[5], (1,), jnp.float32) * 0.1
    g1, be1 = jnp.ones((20,), jnp.float32), jnp.zeros((20,), jnp.float32)
    g2, be2 = jnp.ones((40,), jnp.float32), jnp.zeros((40,), jnp.float32)
    return (w1, b1, g1, be1, w2, b2, g2, be2, w3, b3)


def ref_forward(x, params, eps=1e-5):
    """Pure-JAX reference of the same math, (B, F) layout, full f32 matmuls."""
    (w1, b1, g1, be1, w2, b2, g2, be2, w3, b3) = params
    hp = lax.Precision.HIGHEST

    def bn(h, g, be):
        m = jnp.mean(h, axis=0, keepdims=True)
        v = jnp.mean((h - m) ** 2, axis=0, keepdims=True)   # biased variance
        return (h - m) * lax.rsqrt(v + eps) * g + be

    h = jnp.maximum(jnp.dot(x, w1.T, precision=hp) + b1, 0.0)
    h = bn(h, g1, be1)
    h = jnp.maximum(jnp.dot(h, w2.T, precision=hp) + b2, 0.0)
    h = bn(h, g2, be2)
    return jnp.maximum(jnp.dot(h, w3.T, precision=hp) + b3, 0.0)


if __name__ == "__main__":
    root = jax.random.PRNGKey(0)
    k_p, k_x1, k_x2 = jax.random.split(root, 3)
    params = init_params(k_p)

    def quantized(x, p):
        # Exactly what the kernel consumes: bf16 x and bf16 first-layer weight.
        (w1, *rest) = p
        xq = x.astype(jnp.bfloat16).astype(jnp.float32)
        pq = (w1.astype(jnp.bfloat16).astype(jnp.float32), *rest)
        return xq, pq

    # 1) Whole batch fits in VMEM -> single fused kernel (x fetched once).
    B1 = 8
    x1 = jax.random.normal(k_x1, (B1, 14), jnp.float32)
    out1 = jax.block_until_ready(binary_classifier(x1, params))
    xq1, pq1 = quantized(x1, params)
    ref1 = ref_forward(xq1, pq1)
    assert out1.shape == (B1, 1)
    assert jnp.allclose(out1, ref1, atol=1e-2, rtol=1e-2)

    # 2) Tiled, batch-parallel 3-call path with a ragged (zero-padded) last
    #    tile -> exercises the analytic pad-correction of the BN moments.
    B2 = 400
    x2 = jax.random.normal(k_x2, (B2, 14), jnp.float32)
    out2 = jax.block_until_ready(binary_classifier(x2, params, tile_b=128))
    xq2, pq2 = quantized(x2, params)
    ref2 = ref_forward(xq2, pq2)
    assert out2.shape == (B2, 1)
    assert jnp.allclose(out2, ref2, atol=1e-2, rtol=1e-2)

    print("KERNEL_OK")
</pallas_src>

<mosaic_0001>
module attributes {stable_mosaic.version = 11 : i64} {
  func.func @_fused_kernel(%arg0: memref<8x14xbf16, #tpu.memory_space<vmem>>, %arg1: memref<20x14xbf16, #tpu.memory_space<vmem>>, %arg2: memref<20x3xf32, #tpu.memory_space<vmem>>, %arg3: memref<40x20xf32, #tpu.memory_space<vmem>>, %arg4: memref<40x3xf32, #tpu.memory_space<vmem>>, %arg5: memref<1x40xf32, #tpu.memory_space<vmem>>, %arg6: memref<1x1xf32, #tpu.memory_space<vmem>>, %arg7: memref<1x8xf32, #tpu.memory_space<vmem>>) attributes {dimension_semantics = [], scalar_prefetch = 0 : i64, scratch_operands = 0 : i64, tpu.core_type = #tpu.core_type<tc>} {
    %cst = arith.constant 1.000000e+00 : f32
    %0 = vector.broadcast %cst : f32 to vector<1x8xf32>
    %c0 = arith.constant 0 : index
    %c0_0 = arith.constant 0 : index
    %1 = vector.load %arg2[%c0, %c0_0] : memref<20x3xf32, #tpu.memory_space<vmem>>, vector<20x3xf32>
    %c0_1 = arith.constant 0 : index
    %c0_2 = arith.constant 0 : index
    %2 = vector.load %arg1[%c0_1, %c0_2] : memref<20x14xbf16, #tpu.memory_space<vmem>>, vector<20x14xbf16>
    %c0_3 = arith.constant 0 : index
    %c0_4 = arith.constant 0 : index
    %3 = vector.load %arg0[%c0_3, %c0_4] : memref<8x14xbf16, #tpu.memory_space<vmem>>, vector<8x14xbf16>
    %cst_5 = arith.constant dense<0.000000e+00> : vector<20x8xf32>
    %4 = tpu.matmul %2, %3, %cst_5 {dimension_numbers = #tpu.dot_dimension_numbers<[1], [1], [0], [0], [0, 0, 1, 0], [], []>} : vector<20x14xbf16>, vector<8x14xbf16>, vector<20x8xf32> -> vector<20x8xf32>
    %5 = vector.extract_strided_slice %1 {offsets = [0, 0], sizes = [20, 1], strides = [1, 1]} : vector<20x3xf32> to vector<20x1xf32>
    %6 = vector.broadcast %5 : vector<20x1xf32> to vector<20x8xf32>
    %7 = arith.addf %4, %6 : vector<20x8xf32>
    %cst_6 = arith.constant 0.000000e+00 : f32
    %8 = vector.broadcast %cst_6 : f32 to vector<20x8xf32>
    %9 = arith.maximumf %7, %8 : vector<20x8xf32>
    %cst_7 = arith.constant dense<0.000000e+00> : vector<20x1xf32>
    %10 = tpu.matmul %9, %0, %cst_7 {dimension_numbers = #tpu.dot_dimension_numbers<[1], [1], [0], [0], [0, 0, 1, 0], [], []>} : vector<20x8xf32>, vector<1x8xf32>, vector<20x1xf32> -> vector<20x1xf32>
    %11 = arith.mulf %9, %9 : vector<20x8xf32>
    %cst_8 = arith.constant dense<0.000000e+00> : vector<20x1xf32>
    %12 = tpu.matmul %11, %0, %cst_8 {dimension_numbers = #tpu.dot_dimension_numbers<[1], [1], [0], [0], [0, 0, 1, 0], [], []>} : vector<20x8xf32>, vector<1x8xf32>, vector<20x1xf32> -> vector<20x1xf32>
    %cst_9 = arith.constant 1.250000e-01 : f32
    %13 = vector.broadcast %cst_9 : f32 to vector<20x1xf32>
    %14 = arith.mulf %10, %13 : vector<20x1xf32>
    %cst_10 = arith.constant 1.250000e-01 : f32
    %15 = vector.broadcast %cst_10 : f32 to vector<20x1xf32>
    %16 = arith.mulf %12, %15 : vector<20x1xf32>
    %17 = arith.mulf %14, %14 : vector<20x1xf32>
    %18 = arith.subf %16, %17 : vector<20x1xf32>
    %cst_11 = arith.constant 0.000000e+00 : f32
    %19 = vector.broadcast %cst_11 : f32 to vector<20x1xf32>
    %20 = arith.maximumf %18, %19 : vector<20x1xf32>
    %21 = vector.broadcast %14 : vector<20x1xf32> to vector<20x8xf32>
    %22 = arith.subf %9, %21 : vector<20x8xf32>
    %cst_12 = arith.constant 9.99999974E-6 : f32
    %23 = vector.broadcast %cst_12 : f32 to vector<20x1xf32>
    %24 = arith.addf %20, %23 : vector<20x1xf32>
    %25 = math.rsqrt %24 : vector<20x1xf32>
    %26 = vector.broadcast %25 : vector<20x1xf32> to vector<20x8xf32>
    %27 = arith.mulf %22, %26 : vector<20x8xf32>
    %28 = vector.extract_strided_slice %1 {offsets = [0, 1], sizes = [20, 1], strides = [1, 1]} : vector<20x3xf32> to vector<20x1xf32>
    %29 = vector.broadcast %28 : vector<20x1xf32> to vector<20x8xf32>
    %30 = arith.mulf %27, %29 : vector<20x8xf32>
    %31 = vector.extract_strided_slice %1 {offsets = [0, 2], sizes = [20, 1], strides = [1, 1]} : vector<20x3xf32> to vector<20x1xf32>
    %32 = vector.broadcast %31 : vector<20x1xf32> to vector<20x8xf32>
    %33 = arith.addf %30, %32 : vector<20x8xf32>
    %c0_13 = arith.constant 0 : index
    %c0_14 = arith.constant 0 : index
    %34 = vector.load %arg4[%c0_13, %c0_14] : memref<40x3xf32, #tpu.memory_space<vmem>>, vector<40x3xf32>
    %c0_15 = arith.constant 0 : index
    %c0_16 = arith.constant 0 : index
    %35 = vector.load %arg3[%c0_15, %c0_16] : memref<40x20xf32, #tpu.memory_space<vmem>>, vector<40x20xf32>
    %cst_17 = arith.constant dense<0.000000e+00> : vector<40x8xf32>
    %36 = tpu.matmul %35, %33, %cst_17 {dimension_numbers = #tpu.dot_dimension_numbers<[1], [0], [0], [1], [0, 0, 1, 1], [], []>} : vector<40x20xf32>, vector<20x8xf32>, vector<40x8xf32> -> vector<40x8xf32>
    %37 = vector.extract_strided_slice %34 {offsets = [0, 0], sizes = [40, 1], strides = [1, 1]} : vector<40x3xf32> to vector<40x1xf32>
    %38 = vector.broadcast %37 : vector<40x1xf32> to vector<40x8xf32>
    %39 = arith.addf %36, %38 : vector<40x8xf32>
    %cst_18 = arith.constant 0.000000e+00 : f32
    %40 = vector.broadcast %cst_18 : f32 to vector<40x8xf32>
    %41 = arith.maximumf %39, %40 : vector<40x8xf32>
    %cst_19 = arith.constant dense<0.000000e+00> : vector<40x1xf32>
    %42 = tpu.matmul %41, %0, %cst_19 {dimension_numbers = #tpu.dot_dimension_numbers<[1], [1], [0], [0], [0, 0, 1, 0], [], []>} : vector<40x8xf32>, vector<1x8xf32>, vector<40x1xf32> -> vector<40x1xf32>
    %43 = arith.mulf %41, %41 : vector<40x8xf32>
    %cst_20 = arith.constant dense<0.000000e+00> : vector<40x1xf32>
    %44 = tpu.matmul %43, %0, %cst_20 {dimension_numbers = #tpu.dot_dimension_numbers<[1], [1], [0], [0], [0, 0, 1, 0], [], []>} : vector<40x8xf32>, vector<1x8xf32>, vector<40x1xf32> -> vector<40x1xf32>
    %cst_21 = arith.constant 1.250000e-01 : f32
    %45 = vector.broadcast %cst_21 : f32 to vector<40x1xf32>
    %46 = arith.mulf %42, %45 : vector<40x1xf32>
    %cst_22 = arith.constant 1.250000e-01 : f32
    %47 = vector.broadcast %cst_22 : f32 to vector<40x1xf32>
    %48 = arith.mulf %44, %47 : vector<40x1xf32>
    %49 = arith.mulf %46, %46 : vector<40x1xf32>
    %50 = arith.subf %48, %49 : vector<40x1xf32>
    %cst_23 = arith.constant 0.000000e+00 : f32
    %51 = vector.broadcast %cst_23 : f32 to vector<40x1xf32>
    %52 = arith.maximumf %50, %51 : vector<40x1xf32>
    %53 = vector.broadcast %46 : vector<40x1xf32> to vector<40x8xf32>
    %54 = arith.subf %41, %53 : vector<40x8xf32>
    %cst_24 = arith.constant 9.99999974E-6 : f32
    %55 = vector.broadcast %cst_24 : f32 to vector<40x1xf32>
    %56 = arith.addf %52, %55 : vector<40x1xf32>
    %57 = math.rsqrt %56 : vector<40x1xf32>
    %58 = vector.broadcast %57 : vector<40x1xf32> to vector<40x8xf32>
    %59 = arith.mulf %54, %58 : vector<40x8xf32>
    %60 = vector.extract_strided_slice %34 {offsets = [0, 1], sizes = [40, 1], strides = [1, 1]} : vector<40x3xf32> to vector<40x1xf32>
    %61 = vector.broadcast %60 : vector<40x1xf32> to vector<40x8xf32>
    %62 = arith.mulf %59, %61 : vector<40x8xf32>
    %63 = vector.extract_strided_slice %34 {offsets = [0, 2], sizes = [40, 1], strides = [1, 1]} : vector<40x3xf32> to vector<40x1xf32>
    %64 = vector.broadcast %63 : vector<40x1xf32> to vector<40x8xf32>
    %65 = arith.addf %62, %64 : vector<40x8xf32>
    %c0_25 = arith.constant 0 : index
    %c0_26 = arith.constant 0 : index
    %66 = vector.load %arg5[%c0_25, %c0_26] : memref<1x40xf32, #tpu.memory_space<vmem>>, vector<1x40xf32>
    %cst_27 = arith.constant dense<0.000000e+00> : vector<1x8xf32>
    %67 = tpu.matmul %66, %65, %cst_27 {dimension_numbers = #tpu.dot_dimension_numbers<[1], [0], [0], [1], [0, 0, 1, 1], [], []>} : vector<1x40xf32>, vector<40x8xf32>, vector<1x8xf32> -> vector<1x8xf32>
    %c0_28 = arith.constant 0 : index
    %c0_29 = arith.constant 0 : index
    %68 = vector.load %arg6[%c0_28, %c0_29] : memref<1x1xf32, #tpu.memory_space<vmem>>, vector<1x1xf32>
    %69 = vector.broadcast %68 : vector<1x1xf32> to vector<1x8xf32>
    %70 = arith.addf %67, %69 : vector<1x8xf32>
    %cst_30 = arith.constant 0.000000e+00 : f32
    %71 = vector.broadcast %cst_30 : f32 to vector<1x8xf32>
    %72 = arith.maximumf %70, %71 : vector<1x8xf32>
    %c0_31 = arith.constant 0 : index
    %c0_32 = arith.constant 0 : index
    %73 = vector.load %arg7[%c0_31, %c0_32] : memref<1x8xf32, #tpu.memory_space<vmem>>, vector<1x8xf32>
    tpu.vector_store %arg7[%c0_31, %c0_32], %72 {strides = array<i32>} : memref<1x8xf32, #tpu.memory_space<vmem>>, vector<1x8xf32>,
    return
  }
}

</mosaic_0001>

<llo_original>
// kernel: binary_classifier.1
$region0: #{binary_classifier.1}
  #allocation0 [shape = 'u32[]', space=smem, size = 0x4, offset = 0x4, fixed_abs, tag = 'smem constant byte address 0x4 - core index']
  #allocation1 [shape = 'u32[144,128]{1,0:T(1,128)}', space=vmem, size = 0x12000, scoped, tag = 'internal scratch']
  #allocation2 [shape = 'f32[1,1]{1,0:T(1,128)S(1)}', space=vmem, size = 0x200, scoped, tag = 'scoped memory for binary_classifier.1']
  %s0 = inlined_call_operand.vmem [shape: bf16[8,14], index: 0, kind: input, shape index: {}]
  %s1 = inlined_call_operand.vmem [shape: bf16[20,14], index: 1, kind: input, shape index: {}]
  %s2 = inlined_call_operand.vmem [shape: f32[20,3], index: 2, kind: input, shape index: {}]
  %s3 = inlined_call_operand.vmem [shape: f32[40,20], index: 3, kind: input, shape index: {}]
  %s4 = inlined_call_operand.vmem [shape: f32[40,3], index: 4, kind: input, shape index: {}]
  %s5 = inlined_call_operand.vmem [shape: f32[1,40], index: 5, kind: input, shape index: {}]
  %s6 = inlined_call_operand.<no memory space> [shape: f32[1,1], index: 6, kind: input, shape index: {}]
  %s7 = inlined_call_operand.hbm [shape: f32[1,8], index: 7, kind: output, shape index: {}]
  %s8 = sld [smem:[#allocation0]]
  $region38: #{binary_classifier.1} parent=0
    _
  %s10 = ssub.s32 1, %s8
  %s11 = scalar_select 0, %s10, %s8
  %v12 = vstv %s6
  %13 = vst [vmem:[#allocation2] sm:$0x1] %v12
  $region1: #{binary_classifier.1} parent=0
    #allocation3 [shape = 'u8[512]{0}', space=vmem, size = 0x400, scoped, tag = 'output window, operand 0, single buffered']
    #allocation4 [shape = 's32[1]{0}', space=sflag, size = 0x4, scoped, tag = 'scoped memory for binary_classifier.1']
    %14 = vsyncpa [#allocation4], 0
    // Predicated region
    $region2: #{binary_classifier.1} parent=1 // pred_check
      _
    $region3: #{binary_classifier.1} parent=1 // pred_check_branch
      %16 = sbr.rel (0) target = $region5
    $region4: #{binary_classifier.1} parent=1 // pred_region
      _
    $region5: #{binary_classifier.1} parent=1 // pred_fallthru
      _
    // Predicated region
    $region6: #{binary_classifier.1} parent=1 // pred_check
      _
    $region7: #{binary_classifier.1} parent=1 // pred_check_branch
      %18 = sbr.rel (0) target = $region9
    $region8: #{binary_classifier.1} parent=1 // pred_region
      _
    $region9: #{binary_classifier.1} parent=1 // pred_fallthru
      _
    // Predicated region
    $region10: #{binary_classifier.1} parent=1 // pred_check
      _
    $region11: #{binary_classifier.1} parent=1 // pred_check_branch
      %20 = sbr.rel (0) target = $region13
    $region12: #{binary_classifier.1} parent=1 // pred_region
      _
    $region13: #{binary_classifier.1} parent=1 // pred_fallthru
      _
    // Predicated region
    $region14: #{binary_classifier.1} parent=1 // pred_check
      _
    $region15: #{binary_classifier.1} parent=1 // pred_check_branch
      %22 = sbr.rel (0) target = $region17
    $region16: #{binary_classifier.1} parent=1 // pred_region
      _
    $region17: #{binary_classifier.1} parent=1 // pred_fallthru
      _
    // Predicated region
    $region18: #{binary_classifier.1} parent=1 // pred_check
      _
    $region19: #{binary_classifier.1} parent=1 // pred_check_branch
      %24 = sbr.rel (0) target = $region21
    $region20: #{binary_classifier.1} parent=1 // pred_region
      _
    $region21: #{binary_classifier.1} parent=1 // pred_fallthru
      _
    // Predicated region
    $region22: #{binary_classifier.1} parent=1 // pred_check
      _
    $region23: #{binary_classifier.1} parent=1 // pred_check_branch
      %26 = sbr.rel (0) target = $region25
    $region24: #{binary_classifier.1} parent=1 // pred_region
      _
    $region25: #{binary_classifier.1} parent=1 // pred_fallthru
      _
    // Predicated region
    $region26: #{binary_classifier.1} parent=1 // pred_check
      _
    $region27: #{binary_classifier.1} parent=1 // pred_check_branch
      %28 = sbr.rel (0) target = $region29
    $region28: #{binary_classifier.1} parent=1 // pred_region
      _
    $region29: #{binary_classifier.1} parent=1 // pred_fallthru
      _
    %v30 = vld [vmem:[%s2] sm:$0xff]
    %v31 = vld [vmem:[%s2 + $0x8] sm:$0xff]
    %v32 = vld [vmem:[%s2 + $0x10] sm:$0xf]
    %v33 = vld [vmem:[%s1] sm:$0xf]
    %v34 = vld [vmem:[%s1 + $0x4] sm:$0xf]
    %v35 = vld [vmem:[%s1 + $0x8] sm:$0x3]
    %v36 = vld [vmem:[%s0] sm:$0xf]
    %38 = vset.pattern.permute.xlu0 0
    %39 = vperm.xlu0 %38, %v30
    %v40 = vpop.permute.xlu0 %39
    %43 = vset.pattern.permute.xlu0 0
    %44 = vperm.xlu0 %43, %v31
    %v45 = vpop.permute.xlu0 %44
    %48 = vset.pattern.permute.xlu0 0
    %49 = vperm.xlu0 %48, %v32
    %v50 = vpop.permute.xlu0 %49
    %v55 = vunpack.c.l.b16 %v33
    %v56 = vunpack.c.l.b16 %v34
    %v57 = vunpack.c.l.b16 %v35
    %v58 = vpack.c.b16 %v56, %v55
    %v59 = vpack.c.b16 %v57, %v57
    %vm60 = vcmask 113664
    %v62 = vsel %vm60, %v58, 0
    %v65 = vsel %vm60, %v59, 0
    %v68 = vsel %vm60, %v36, 0
    %70 = vmatprep.subr.bf16.mxu0 0
    %71 = vmatpush1.bf16.xpose.msra.mxu0 0
    %72 = vmatprep.subr.bf16.mxu0 0
    %73 = vmatpush1.bf16.xpose.msra.mxu0 0
    %74 = vmatprep.subr.bf16.mxu0 0
    %75 = vmatpush1.bf16.xpose.msra.mxu0 0
    %76 = vmatprep.subr.bf16.mxu0 0
    %77 = vmatpush1.bf16.xpose.msra.mxu0 0
    %78 = vmatprep.subr.bf16.mxu0 0
    %79 = vmatpush1.bf16.xpose.msra.mxu0 0
    %80 = vmatprep.subr.bf16.mxu0 0
    %81 = vmatpush1.bf16.xpose.msra.mxu0 0
    %82 = vmatprep.subr.bf16.mxu0 0
    %83 = vmatpush1.bf16.xpose.msra.mxu0 0
    %84 = vmatprep.subr.bf16.mxu0 0
    %85 = vmatpush1.bf16.xpose.msra.mxu0 %v68
    %86 = vmatprep.subr.bf16.mxu0 0
    %87 = vmatpush2.bf16.xpose.msra.mxu0 0
    %88 = vmatprep.subr.bf16.mxu0 0
    %89 = vmatpush2.bf16.xpose.msra.mxu0 0
    %90 = vmatprep.subr.bf16.mxu0 0
    %91 = vmatpush2.bf16.xpose.msra.mxu0 0
    %92 = vmatprep.subr.bf16.mxu0 0
    %93 = vmatpush2.bf16.xpose.msra.mxu0 0
    %94 = vmatprep.subr.bf16.mxu0 0
    %95 = vmatpush2.bf16.xpose.msra.mxu0 0
    %96 = vmatprep.subr.bf16.mxu0 0
    %97 = vmatpush2.bf16.xpose.msra.mxu0 0
    %98 = vmatprep.subr.bf16.mxu0 0
    %99 = vmatpush2.bf16.xpose.msra.mxu0 0
    %100 = vmatprep.subr.bf16.mxu0 0
    %101 = vmatpush2.bf16.xpose.msra.mxu0 0
    %102 = vmatprep.mubr.bf16.mxu0 0
    %103 = vmatmul.mubr.bf16.gmra.mxu0 %v62
    %v104 = vpop.f32.mrf.mxu0
    %v105 = vadd.f32 %v40, %v104
    %v106 = vpop.f32.mrf.mxu0
    %v107 = vpop.f32.mrf.mxu0
    %v108 = vadd.f32 %v45, %v107
    %v109 = vpop.f32.mrf.mxu0
    %110 = vmatprep.mubr.bf16.mxu0 0
    %111 = vmatmul.mubr.bf16.gmra.mxu0 %v65
    %v112 = vpop.f32.mrf.mxu0
    %v113 = vadd.f32 %v50, %v112
    %v114 = vpop.f32.mrf.mxu0
    %v115 = vpop.f32.mrf.mxu0
    %v116 = vpop.f32.mrf.mxu0
    %117 = vdwg.mxu0
    %v118 = vmax.f32 %v105, 0.0
    %v119 = vmax.f32 %v108, 0.0
    %v120 = vmax.f32 %v113, 0.0
    %vm121 = vcmask 64512
    %v122 = vsel %vm121, %v118, 0.0
    %123 = vadd.xlane.f32.xlu0 %v122
    %v124 = vpop.xlane.xlu0 %123
    %v125 = vsel %vm121, %v119, 0.0
    %126 = vadd.xlane.f32.xlu0 %v125
    %v127 = vpop.xlane.xlu0 %126
    %vm128 = vcmask 60416
    %v129 = vsel %vm128, %v120, 0.0
    %130 = vadd.xlane.f32.xlu0 %v129
    %v131 = vpop.xlane.xlu0 %130
    %v132 = vmul.f32 %v118, %v118
    %v133 = vmul.f32 %v119, %v119
    %v134 = vmul.f32 %v120, %v120
    %v135 = vsel %vm121, %v132, 0.0
    %136 = vadd.xlane.f32.xlu0 %v135
    %v137 = vpop.xlane.xlu0 %136
    %v138 = vsel %vm121, %v133, 0.0
    %139 = vadd.xlane.f32.xlu0 %v138
    %v140 = vpop.xlane.xlu0 %139
    %v141 = vsel %vm128, %v134, 0.0
    %142 = vadd.xlane.f32.xlu0 %v141
    %v143 = vpop.xlane.xlu0 %142
    %v144 = vmul.f32 %v124, 0.125
    %v145 = vmul.f32 %v127, 0.125
    %v146 = vmul.f32 %v131, 0.125
    %v147 = vmul.f32 %v137, 0.125
    %v148 = vmul.f32 %v140, 0.125
    %v149 = vmul.f32 %v143, 0.125
    %v150 = vmul.f32 %v144, %v144
    %v151 = vmul.f32 %v145, %v145
    %v152 = vmul.f32 %v146, %v146
    %v153 = vsub.f32 %v147, %v150
    %v154 = vsub.f32 %v148, %v151
    %v155 = vsub.f32 %v149, %v152
    %v156 = vmax.f32 %v153, 0.0
    %v157 = vmax.f32 %v154, 0.0
    %v158 = vmax.f32 %v155, 0.0
    %v159 = vsub.f32 %v118, %v144
    %v160 = vsub.f32 %v119, %v145
    %v161 = vsub.f32 %v120, %v146
    %v162 = vadd.f32 %v156, 1e-05
    %v163 = vadd.f32 %v157, 1e-05
    %v164 = vadd.f32 %v158, 1e-05
    %v165 = vrsqrt.pop %v162
    %v166 = vrsqrt.pop %v163
    %v167 = vrsqrt.pop %v164
    %v168 = vmul.f32 %v159, %v165
    %v169 = vmul.f32 %v160, %v166
    %v170 = vmul.f32 %v161, %v167
    %171 = vset.pattern.permute.xlu0 1
    %172 = vperm.xlu0 %171, %v30
    %v173 = vpop.permute.xlu0 %172
    %175 = vset.pattern.permute.xlu0 1
    %176 = vperm.xlu0 %175, %v31
    %v177 = vpop.permute.xlu0 %176
    %179 = vset.pattern.permute.xlu0 1
    %180 = vperm.xlu0 %179, %v32
    %v181 = vpop.permute.xlu0 %180
    %v183 = vmul.f32 %v168, %v173
    %v184 = vmul.f32 %v169, %v177
    %v185 = vmul.f32 %v170, %v181
    %186 = vset.pattern.permute.xlu0 2
    %187 = vperm.xlu0 %186, %v30
    %v188 = vpop.permute.xlu0 %187
    %190 = vset.pattern.permute.xlu0 2
    %191 = vperm.xlu0 %190, %v31
    %v192 = vpop.permute.xlu0 %191
    %194 = vset.pattern.permute.xlu0 2
    %195 = vperm.xlu0 %194, %v32
    %v196 = vpop.permute.xlu0 %195
    %v198 = vadd.f32 %v183, %v188
    %v199 = vadd.f32 %v184, %v192
    %v200 = vadd.f32 %v185, %v196
    %v201 = vld [vmem:[%s4] sm:$0xff]
    %v202 = vld [vmem:[%s4 + $0x8] sm:$0xff]
    %v203 = vld [vmem:[%s4 + $0x10] sm:$0xff]
    %v204 = vld [vmem:[%s4 + $0x18] sm:$0xff]
    %v205 = vld [vmem:[%s4 + $0x20] sm:$0xff]
    %v206 = vld [vmem:[%s3] sm:$0xff]
    %v207 = vld [vmem:[%s3 + $0x8] sm:$0xff]
    %v208 = vld [vmem:[%s3 + $0x10] sm:$0xff]
    %v209 = vld [vmem:[%s3 + $0x18] sm:$0xff]
    %v210 = vld [vmem:[%s3 + $0x20] sm:$0xff]
    %212 = vset.pattern.permute.xlu0 0
    %213 = vperm.xlu0 %212, %v201
    %v214 = vpop.permute.xlu0 %213
    %217 = vset.pattern.permute.xlu0 0
    %218 = vperm.xlu0 %217, %v202
    %v219 = vpop.permute.xlu0 %218
    %222 = vset.pattern.permute.xlu0 0
    %223 = vperm.xlu0 %222, %v203
    %v224 = vpop.permute.xlu0 %223
    %227 = vset.pattern.permute.xlu0 0
    %228 = vperm.xlu0 %227, %v204
    %v229 = vpop.permute.xlu0 %228
    %232 = vset.pattern.permute.xlu0 0
    %233 = vperm.xlu0 %232, %v205
    %v234 = vpop.permute.xlu0 %233
    %vm236 = vcmask 162816
    %v238 = vsel %vm236, %v206, 0
    %v241 = vsel %vm236, %v207, 0
    %v244 = vsel %vm236, %v208, 0
    %v247 = vsel %vm236, %v209, 0
    %v250 = vsel %vm236, %v210, 0
    %vm252 = vcmask 1043456
    %v254 = vsel %vm252, %v200, 0
    %256 = vmatprep.subr.mxu0 0.0
    %257 = vmatpush1.msra.mxu0 0.0
    %258 = vmatprep.subr.mxu0 0.0
    %259 = vmatpush1.msra.mxu0 0.0
    %260 = vmatprep.subr.mxu0 0.0
    %261 = vmatpush1.msra.mxu0 0.0
    %262 = vmatprep.subr.mxu0 0.0
    %263 = vmatpush1.msra.mxu0 0.0
    %264 = vmatprep.subr.mxu0 0.0
    %265 = vmatpush1.msra.mxu0 0.0
    %266 = vmatprep.subr.mxu0 0.0
    %267 = vmatpush1.msra.mxu0 0.0
    %268 = vmatprep.subr.mxu0 0.0
    %269 = vmatpush1.msra.mxu0 0.0
    %270 = vmatprep.subr.mxu0 0.0
    %271 = vmatpush1.msra.mxu0 0.0
    %272 = vmatprep.subr.mxu0 0.0
    %273 = vmatpush1.msra.mxu0 0.0
    %274 = vmatprep.subr.mxu0 0.0
    %275 = vmatpush1.msra.mxu0 0.0
    %276 = vmatprep.subr.mxu0 0.0
    %277 = vmatpush1.msra.mxu0 0.0
    %278 = vmatprep.subr.mxu0 0.0
    %279 = vmatpush1.msra.mxu0 0.0
    %280 = vmatprep.subr.mxu0 0.0
    %281 = vmatpush1.msra.mxu0 0.0
    %282 = vmatprep.subr.mxu0 0.0
    %283 = vmatpush1.msra.mxu0 %v254
    %284 = vmatprep.subr.mxu0 0.0
    %285 = vmatpush1.msra.mxu0 %v199
    %286 = vmatprep.subr.mxu0 0.0
    %287 = vmatpush1.msra.mxu0 %v198
    %288 = vmatprep.subr.mxu0 0.0
    %289 = vmatpush2.msra.mxu0 0.0
    %290 = vmatprep.subr.mxu0 0.0
    %291 = vmatpush2.msra.mxu0 0.0
    %292 = vmatprep.subr.mxu0 0.0
    %293 = vmatpush2.msra.mxu0 0.0
    %294 = vmatprep.subr.mxu0 0.0
    %295 = vmatpush2.msra.mxu0 0.0
    %296 = vmatprep.subr.mxu0 0.0
    %297 = vmatpush2.msra.mxu0 0.0
    %298 = vmatprep.subr.mxu0 0.0
    %299 = vmatpush2.msra.mxu0 0.0
    %300 = vmatprep.subr.mxu0 0.0
    %301 = vmatpush2.msra.mxu0 0.0
    %302 = vmatprep.subr.mxu0 0.0
    %303 = vmatpush2.msra.mxu0 0.0
    %304 = vmatprep.subr.mxu0 0.0
    %305 = vmatpush2.msra.mxu0 0.0
    %306 = vmatprep.subr.mxu0 0.0
    %307 = vmatpush2.msra.mxu0 0.0
    %308 = vmatprep.subr.mxu0 0.0
    %309 = vmatpush2.msra.mxu0 0.0
    %310 = vmatprep.subr.mxu0 0.0
    %311 = vmatpush2.msra.mxu0 0.0
    %312 = vmatprep.subr.mxu0 0.0
    %313 = vmatpush2.msra.mxu0 0.0
    %314 = vmatprep.subr.mxu0 0.0
    %315 = vmatpush2.msra.mxu0 0.0
    %316 = vmatprep.subr.mxu0 0.0
    %317 = vmatpush2.msra.mxu0 0.0
    %318 = vmatprep.subr.mxu0 0.0
    %319 = vmatpush2.msra.mxu0 0.0
    %320 = vmatprep.mubr.f32.mxu0 0.0
    %321 = vmatmul.mubr.f32.gmra.mxu0 %v238
    %v322 = vpop.f32.mrf.mxu0
    %v323 = vadd.f32 %v214, %v322
    %v324 = vpop.f32.mrf.mxu0
    %325 = vmatprep.mubr.f32.mxu0 0.0
    %326 = vmatmul.mubr.f32.gmra.mxu0 %v241
    %v327 = vpop.f32.mrf.mxu0
    %v328 = vadd.f32 %v219, %v327
    %v329 = vpop.f32.mrf.mxu0
    %330 = vmatprep.mubr.f32.mxu0 0.0
    %331 = vmatmul.mubr.f32.gmra.mxu0 %v244
    %v332 = vpop.f32.mrf.mxu0
    %v333 = vadd.f32 %v224, %v332
    %v334 = vpop.f32.mrf.mxu0
    %335 = vmatprep.mubr.f32.mxu0 0.0
    %336 = vmatmul.mubr.f32.gmra.mxu0 %v247
    %v337 = vpop.f32.mrf.mxu0
    %v338 = vadd.f32 %v229, %v337
    %v339 = vpop.f32.mrf.mxu0
    %340 = vmatprep.mubr.f32.mxu0 0.0
    %341 = vmatmul.mubr.f32.gmra.mxu0 %v250
    %v342 = vpop.f32.mrf.mxu0
    %v343 = vadd.f32 %v234, %v342
    %v344 = vpop.f32.mrf.mxu0
    %345 = vdwg.mxu0
    %v346 = vmax.f32 %v323, 0.0
    %v347 = vmax.f32 %v328, 0.0
    %v348 = vmax.f32 %v333, 0.0
    %v349 = vmax.f32 %v338, 0.0
    %v350 = vmax.f32 %v343, 0.0
    %v351 = vsel %vm121, %v346, 0.0
    %352 = vadd.xlane.f32.xlu0 %v351
    %v353 = vpop.xlane.xlu0 %352
    %v354 = vsel %vm121, %v347, 0.0
    %355 = vadd.xlane.f32.xlu0 %v354
    %v356 = vpop.xlane.xlu0 %355
    %v357 = vsel %vm121, %v348, 0.0
    %358 = vadd.xlane.f32.xlu0 %v357
    %v359 = vpop.xlane.xlu0 %358
    %v360 = vsel %vm121, %v349, 0.0
    %361 = vadd.xlane.f32.xlu0 %v360
    %v362 = vpop.xlane.xlu0 %361
    %v363 = vsel %vm121, %v350, 0.0
    %364 = vadd.xlane.f32.xlu0 %v363
    %v365 = vpop.xlane.xlu0 %364
    %v366 = vmul.f32 %v346, %v346
    %v367 = vmul.f32 %v347, %v347
    %v368 = vmul.f32 %v348, %v348
    %v369 = vmul.f32 %v349, %v349
    %v370 = vmul.f32 %v350, %v350
    %v371 = vsel %vm121, %v366, 0.0
    %372 = vadd.xlane.f32.xlu0 %v371
    %v373 = vpop.xlane.xlu0 %372
    %v374 = vsel %vm121, %v367, 0.0
    %375 = vadd.xlane.f32.xlu0 %v374
    %v376 = vpop.xlane.xlu0 %375
    %v377 = vsel %vm121, %v368, 0.0
    %378 = vadd.xlane.f32.xlu0 %v377
    %v379 = vpop.xlane.xlu0 %378
    %v380 = vsel %vm121, %v369, 0.0
    %381 = vadd.xlane.f32.xlu0 %v380
    %v382 = vpop.xlane.xlu0 %381
    %v383 = vsel %vm121, %v370, 0.0
    %384 = vadd.xlane.f32.xlu0 %v383
    %v385 = vpop.xlane.xlu0 %384
    %v386 = vmul.f32 %v353, 0.125
    %v387 = vmul.f32 %v356, 0.125
    %v388 = vmul.f32 %v359, 0.125
    %v389 = vmul.f32 %v362, 0.125
    %v390 = vmul.f32 %v365, 0.125
    %v391 = vmul.f32 %v373, 0.125
    %v392 = vmul.f32 %v376, 0.125
    %v393 = vmul.f32 %v379, 0.125
    %v394 = vmul.f32 %v382, 0.125
    %v395 = vmul.f32 %v385, 0.125
    %v396 = vmul.f32 %v386, %v386
    %v397 = vmul.f32 %v387, %v387
    %v398 = vmul.f32 %v388, %v388
    %v399 = vmul.f32 %v389, %v389
    %v400 = vmul.f32 %v390, %v390
    %v401 = vsub.f32 %v391, %v396
    %v402 = vsub.f32 %v392, %v397
    %v403 = vsub.f32 %v393, %v398
    %v404 = vsub.f32 %v394, %v399
    %v405 = vsub.f32 %v395, %v400
    %v406 = vmax.f32 %v401, 0.0
    %v407 = vmax.f32 %v402, 0.0
    %v408 = vmax.f32 %v403, 0.0
    %v409 = vmax.f32 %v404, 0.0
    %v410 = vmax.f32 %v405, 0.0
    %v411 = vsub.f32 %v346, %v386
    %v412 = vsub.f32 %v347, %v387
    %v413 = vsub.f32 %v348, %v388
    %v414 = vsub.f32 %v349, %v389
    %v415 = vsub.f32 %v350, %v390
    %v416 = vadd.f32 %v406, 1e-05
    %v417 = vadd.f32 %v407, 1e-05
    %v418 = vadd.f32 %v408, 1e-05
    %v419 = vadd.f32 %v409, 1e-05
    %v420 = vadd.f32 %v410, 1e-05
    %v421 = vrsqrt.pop %v416
    %v422 = vrsqrt.pop %v417
    %v423 = vrsqrt.pop %v418
    %v424 = vrsqrt.pop %v419
    %v425 = vrsqrt.pop %v420
    %v426 = vmul.f32 %v411, %v421
    %v427 = vmul.f32 %v412, %v422
    %v428 = vmul.f32 %v413, %v423
    %v429 = vmul.f32 %v414, %v424
    %v430 = vmul.f32 %v415, %v425
    %431 = vset.pattern.permute.xlu0 1
    %432 = vperm.xlu0 %431, %v201
    %v433 = vpop.permute.xlu0 %432
    %435 = vset.pattern.permute.xlu0 1
    %436 = vperm.xlu0 %435, %v202
    %v437 = vpop.permute.xlu0 %436
    %439 = vset.pattern.permute.xlu0 1
    %440 = vperm.xlu0 %439, %v203
    %v441 = vpop.permute.xlu0 %440
    %443 = vset.pattern.permute.xlu0 1
    %444 = vperm.xlu0 %443, %v204
    %v445 = vpop.permute.xlu0 %444
    %447 = vset.pattern.permute.xlu0 1
    %448 = vperm.xlu0 %447, %v205
    %v449 = vpop.permute.xlu0 %448
    %v451 = vmul.f32 %v426, %v433
    %v452 = vmul.f32 %v427, %v437
    %v453 = vmul.f32 %v428, %v441
    %v454 = vmul.f32 %v429, %v445
    %v455 = vmul.f32 %v430, %v449
    %456 = vset.pattern.permute.xlu0 2
    %457 = vperm.xlu0 %456, %v201
    %v458 = vpop.permute.xlu0 %457
    %460 = vset.pattern.permute.xlu0 2
    %461 = vperm.xlu0 %460, %v202
    %v462 = vpop.permute.xlu0 %461
    %464 = vset.pattern.permute.xlu0 2
    %465 = vperm.xlu0 %464, %v203
    %v466 = vpop.permute.xlu0 %465
    %468 = vset.pattern.permute.xlu0 2
    %469 = vperm.xlu0 %468, %v204
    %v470 = vpop.permute.xlu0 %469
    %472 = vset.pattern.permute.xlu0 2
    %473 = vperm.xlu0 %472, %v205
    %v474 = vpop.permute.xlu0 %473
    %v476 = vadd.f32 %v451, %v458
    %v477 = vadd.f32 %v452, %v462
    %v478 = vadd.f32 %v453, %v466
    %v479 = vadd.f32 %v454, %v470
    %v480 = vadd.f32 %v455, %v474
    %v481 = vld [vmem:[%s5] sm:$0x1]
    %v482 = vld [vmem:[#allocation2] sm:$0x1]
    %484 = vset.pattern.permute.xlu0 0
    %485 = vperm.xlu0 %484, %v482
    %v486 = vpop.permute.xlu0 %485
    %v488 = vlaneseq
    %v489 = vshrl.u32 %v488, 7
    %v490 = vsub.s32 0, %v489
    %v491 = vrot.slane %v486, %v490
    %vm492 = vcmask 326656
    %v494 = vsel %vm492, %v481, 0
    %496 = vmatprep.subr.mxu0 0.0
    %497 = vmatpush1.msra.mxu0 0.0
    %498 = vmatprep.subr.mxu0 0.0
    %499 = vmatpush1.msra.mxu0 0.0
    %500 = vmatprep.subr.mxu0 0.0
    %501 = vmatpush1.msra.mxu0 0.0
    %502 = vmatprep.subr.mxu0 0.0
    %503 = vmatpush1.msra.mxu0 0.0
    %504 = vmatprep.subr.mxu0 0.0
    %505 = vmatpush1.msra.mxu0 0.0
    %506 = vmatprep.subr.mxu0 0.0
    %507 = vmatpush1.msra.mxu0 0.0
    %508 = vmatprep.subr.mxu0 0.0
    %509 = vmatpush1.msra.mxu0 0.0
    %510 = vmatprep.subr.mxu0 0.0
    %511 = vmatpush1.msra.mxu0 0.0
    %512 = vmatprep.subr.mxu0 0.0
    %513 = vmatpush1.msra.mxu0 0.0
    %514 = vmatprep.subr.mxu0 0.0
    %515 = vmatpush1.msra.mxu0 0.0
    %516 = vmatprep.subr.mxu0 0.0
    %517 = vmatpush1.msra.mxu0 0.0
    %518 = vmatprep.subr.mxu0 0.0
    %519 = vmatpush1.msra.mxu0 %v480
    %520 = vmatprep.subr.mxu0 0.0
    %521 = vmatpush1.msra.mxu0 %v479
    %522 = vmatprep.subr.mxu0 0.0
    %523 = vmatpush1.msra.mxu0 %v478
    %524 = vmatprep.subr.mxu0 0.0
    %525 = vmatpush1.msra.mxu0 %v477
    %526 = vmatprep.subr.mxu0 0.0
    %527 = vmatpush1.msra.mxu0 %v476
    %528 = vmatprep.subr.mxu0 0.0
    %529 = vmatpush2.msra.mxu0 0.0
    %530 = vmatprep.subr.mxu0 0.0
    %531 = vmatpush2.msra.mxu0 0.0
    %532 = vmatprep.subr.mxu0 0.0
    %533 = vmatpush2.msra.mxu0 0.0
    %534 = vmatprep.subr.mxu0 0.0
    %535 = vmatpush2.msra.mxu0 0.0
    %536 = vmatprep.subr.mxu0 0.0
    %537 = vmatpush2.msra.mxu0 0.0
    %538 = vmatprep.subr.mxu0 0.0
    %539 = vmatpush2.msra.mxu0 0.0
    %540 = vmatprep.subr.mxu0 0.0
    %541 = vmatpush2.msra.mxu0 0.0
    %542 = vmatprep.subr.mxu0 0.0
    %543 = vmatpush2.msra.mxu0 0.0
    %544 = vmatprep.subr.mxu0 0.0
    %545 = vmatpush2.msra.mxu0 0.0
    %546 = vmatprep.subr.mxu0 0.0
    %547 = vmatpush2.msra.mxu0 0.0
    %548 = vmatprep.subr.mxu0 0.0
    %549 = vmatpush2.msra.mxu0 0.0
    %550 = vmatprep.subr.mxu0 0.0
    %551 = vmatpush2.msra.mxu0 0.0
    %552 = vmatprep.subr.mxu0 0.0
    %553 = vmatpush2.msra.mxu0 0.0
    %554 = vmatprep.subr.mxu0 0.0
    %555 = vmatpush2.msra.mxu0 0.0
    %556 = vmatprep.subr.mxu0 0.0
    %557 = vmatpush2.msra.mxu0 0.0
    %558 = vmatprep.subr.mxu0 0.0
    %559 = vmatpush2.msra.mxu0 0.0
    %560 = vmatprep.mubr.f32.mxu0 0.0
    %561 = vmatmul.mubr.f32.gmra.mxu0 %v494
    %v562 = vpop.f32.mrf.mxu0
    %v563 = vadd.f32 %v491, %v562
    %v564 = vpop.f32.mrf.mxu0
    %565 = vdwg.mxu0
    %v566 = vmax.f32 %v563, 0.0
    %vm567 = vcmask 57344
    %568 = vst.msk [vmem:[#allocation3] sm:$0x1] %vm567, %v566
    // Predicated region
    $region30: #{binary_classifier.1} parent=1 // pred_check
      _
    $region31: #{binary_classifier.1} parent=1 // pred_check_branch
      %570 = sbr.rel (0) target = $region33
    $region32: #{binary_classifier.1} parent=1 // pred_region
      %s572 = ssub.s32 16, 16
      %573 = vsyncadd [#allocation4], %s572
      %s575 = sshll.u32 [#allocation3], 4
      %s576 = int_to_ptr.vmem [resolvable:$true] %s575
      %578 = dma.vmem_to_hbm [thread:$0]  %s576, 16, %s7, [#allocation4]
    $region33: #{binary_classifier.1} parent=1 // pred_fallthru
      _
    // Predicated region
    $region34: #{binary_classifier.1} parent=1 // pred_check
      _
    $region35: #{binary_classifier.1} parent=1 // pred_check_branch
      %580 = sbr.rel (0) target = $region37
    $region36: #{binary_classifier.1} parent=1 // pred_region
      %581 = dma.done [#allocation4], 16
    $region37: #{binary_classifier.1} parent=1 // pred_fallthru
      _
    %582 = vsyncpa [#allocation4], 1

</llo_original>
